<compile_context>
chip_gen: v7x
topology: tpu7x:2x2x1
jax: 0.10.0
libtpu: 0.0.40
codegen_flags: <defaults>
</compile_context>

<pallas_src>
import functools

import numpy as np

import jax
import jax.numpy as jnp
from jax import lax
from jax.experimental import pallas as pl
from jax.experimental.pallas import tpu as pltpu

_LANES = 128
_SUBLANES = 8
_CHUNK_ELEMS = _SUBLANES * _LANES          # one (8,128) vreg-shaped chunk
_SUB_CHUNKS = 8                            # chunks per inner-loop sub-slice
_SUB_ELEMS = _SUB_CHUNKS * _CHUNK_ELEMS    # 8192 elements (32 KiB f32)
_FAST_PATH_BYTES = 4 * 1024 * 1024         # below this, plain jnp wins


def _round_up(x, m):
    return ((x + m - 1) // m) * m


def _cdiv(a, b):
    return -(-a // b)


@functools.lru_cache(maxsize=None)
def _tile_plan():
    """(max_tile_chunks, vmem_limit_bytes) chosen from the chip's VMEM size."""
    cap = None
    try:
        cap = getattr(pltpu.get_tpu_info(), "vmem_capacity_bytes", None)
    except Exception:
        cap = None
    if not isinstance(cap, int) or cap <= 0:
        cap = 64 * 1024 * 1024                       # conservative (v7x-sized)
    if cap >= 128 * 1024 * 1024:                     # v5e / v6e
        # 16 MiB input blocks: 2 inputs x 2 pipeline buffers = 64 MiB streaming.
        return 4096, 80 * 1024 * 1024
    # v7x (64 MiB VMEM): 8 MiB blocks -> 32 MiB streaming + headroom.
    return 2048, 44 * 1024 * 1024


@functools.partial(
    jax.jit,
    static_argnames=("n_par", "n_steps", "tile_chunks", "num_slots",
                     "vmem_limit_bytes"))
def _sc_partial_sums(ss_sid, x, y, *, n_par, n_steps, tile_chunks, num_slots,
                     vmem_limit_bytes):
    """Segmented partial sums of (y-x)^2 and y^2 over a flat (chunks,8,128) stream.

    ss_sid: (total_chunks // _SUB_CHUNKS,) int32, sample id per 8-chunk sub-slice.
    x, y:   (n_par * n_steps * tile_chunks, 8, 128), zero padded (exact).
    Returns per-sample (num, den), each of shape (num_slots,), float32.
    """
    n_sub = tile_chunks // _SUB_CHUNKS

    def kernel(ss_sid_ref, x_ref, y_ref, num_ref, den_ref):
        k = pl.program_id(1)

        @pl.when(k == 0)
        def _():
            num_ref[...] = jnp.zeros_like(num_ref)
            den_ref[...] = jnp.zeros_like(den_ref)

        # Global sub-slice index of the start of this block.
        ss_base = (pl.program_id(0) * n_steps + k) * n_sub

        def body(j, carry):
            sid = ss_sid_ref[ss_base + j]
            off = pl.multiple_of(j * _SUB_CHUNKS, _SUB_CHUNKS)
            xs = x_ref[pl.ds(off, _SUB_CHUNKS)].astype(jnp.float32)  # (8,8,128)
            ys = y_ref[pl.ds(off, _SUB_CHUNKS)].astype(jnp.float32)
            d = ys - xs
            # Pure element-wise VPU folds over the sub-slice (no cross-lane
            # work); each accumulator slot is exactly one vreg, selected by
            # the prefetched sample id (segmented accumulation).
            num_ref[sid] += jnp.sum(d * d, axis=0)
            den_ref[sid] += jnp.sum(ys * ys, axis=0)
            return carry

        lax.fori_loop(0, n_sub, body, 0, unroll=min(4, n_sub))

    num_p, den_p = pl.pallas_call(
        kernel,
        out_shape=(
            jax.ShapeDtypeStruct((n_par * num_slots, _SUBLANES, _LANES),
                                 jnp.float32),
            jax.ShapeDtypeStruct((n_par * num_slots, _SUBLANES, _LANES),
                                 jnp.float32),
        ),
        grid_spec=pltpu.PrefetchScalarGridSpec(
            num_scalar_prefetch=1,
            grid=(n_par, n_steps),
            in_specs=[
                pl.BlockSpec((tile_chunks, _SUBLANES, _LANES),
                             lambda p, k, sid: (p * n_steps + k, 0, 0)),
                pl.BlockSpec((tile_chunks, _SUBLANES, _LANES),
                             lambda p, k, sid: (p * n_steps + k, 0, 0)),
            ],
            out_specs=(
                pl.BlockSpec((num_slots, _SUBLANES, _LANES),
                             lambda p, k, sid: (p, 0, 0)),
                pl.BlockSpec((num_slots, _SUBLANES, _LANES),
                             lambda p, k, sid: (p, 0, 0)),
            ),
        ),
        compiler_params=pltpu.CompilerParams(
            dimension_semantics=("parallel", "arbitrary"),
            vmem_limit_bytes=vmem_limit_bytes,
        ),
    )(ss_sid, x, y)

    # Tiny epilogue: fold per-core halves and the (8,128) accumulator lanes.
    num = num_p.reshape(n_par, num_slots, -1).sum(axis=(0, 2))
    den = den_p.reshape(n_par, num_slots, -1).sum(axis=(0, 2))
    return num, den


def spectral_convergence_loss(x_mag_list, y_mag_list, sentence_avg,
                              *, use_pallas=None):
    """Mirror of SpectralConvergenceLoss.forward (summed over the list)."""
    x_mag_list = list(x_mag_list)
    y_mag_list = list(y_mag_list)
    assert len(x_mag_list) == len(y_mag_list) and len(x_mag_list) > 0
    b = len(x_mag_list)

    sizes = []
    for x_mag, y_mag in zip(x_mag_list, y_mag_list):
        assert x_mag.shape == y_mag.shape
        sizes.append(int(x_mag.size))

    if sentence_avg:
        weights = [1.0] * b
    else:
        weights = [float(y.shape[0]) for y in y_mag_list]

    if use_pallas is None:
        use_pallas = 2 * 4 * sum(sizes) >= _FAST_PATH_BYTES
    if not use_pallas:
        # Small-input fast path: pallas dispatch + packing overhead dominates.
        loss = jnp.float32(0.0)
        for x_mag, y_mag, w in zip(x_mag_list, y_mag_list, weights):
            d = (y_mag - x_mag).astype(jnp.float32)
            num = jnp.sum(d * d)
            den = jnp.sum(y_mag.astype(jnp.float32) ** 2)
            loss = loss + w * (jnp.sqrt(num) / jnp.sqrt(den))
        return loss

    # ---------- Static layout planning (all shapes known at trace time) ----
    dt = jnp.result_type(*(a.dtype for a in x_mag_list + y_mag_list))
    max_tile_chunks, vmem_limit_bytes = _tile_plan()

    ss_counts = [_cdiv(s, _SUB_ELEMS) for s in sizes]   # sub-slices per sample
    total_ss = sum(ss_counts)
    total_chunks = total_ss * _SUB_CHUNKS

    n_par = 2 if total_ss >= 2 else 1                   # engage both v7x TCs
    per_shard = _round_up(_cdiv(total_chunks, n_par), _SUB_CHUNKS)
    n_steps = _cdiv(per_shard, max_tile_chunks)
    tile_chunks = _round_up(_cdiv(per_shard, n_steps), _SUB_CHUNKS)
    padded_ss = n_par * n_steps * (tile_chunks // _SUB_CHUNKS)
    padded_elems = padded_ss * _SUB_ELEMS

    # Per-sub-slice sample-id table (scalar-prefetched into SMEM).  Trailing
    # pad sub-slices carry all-zero data, so attributing them to the last
    # sample is exact (they contribute 0 to both sums of squares).
    ss_sid = np.repeat(np.arange(b, dtype=np.int32), ss_counts)
    ss_sid = np.pad(ss_sid, (0, padded_ss - total_ss), constant_values=b - 1)
    ss_sid = jnp.asarray(ss_sid)

    def _pack(arr_list):
        # One flat concatenation (single copy); per-sample zero pad only to an
        # 8192-element sub-slice boundary, plus one small tail pad.
        pieces = []
        used = 0
        for a, n_ss in zip(arr_list, ss_counts):
            flat = a.astype(dt).reshape(-1)
            pieces.append(flat)
            pad = n_ss * _SUB_ELEMS - flat.shape[0]
            if pad:
                pieces.append(jnp.zeros((pad,), dt))
            used += n_ss * _SUB_ELEMS
        if padded_elems - used:
            pieces.append(jnp.zeros((padded_elems - used,), dt))
        flat = jnp.concatenate(pieces) if len(pieces) > 1 else pieces[0]
        return flat.reshape(-1, _SUBLANES, _LANES)

    x = _pack(x_mag_list)
    y = _pack(y_mag_list)

    num, den = _sc_partial_sums(
        ss_sid, x, y, n_par=n_par, n_steps=n_steps, tile_chunks=tile_chunks,
        num_slots=b, vmem_limit_bytes=vmem_limit_bytes)

    # Same 0/0 -> NaN semantics as the PyTorch reference (no epsilon added).
    loss_per_sample = jnp.sqrt(num) / jnp.sqrt(den)
    return jnp.sum(loss_per_sample * jnp.asarray(weights, jnp.float32))


def _reference(x_mag_list, y_mag_list, sentence_avg):
    loss = 0.0
    for x_mag, y_mag in zip(x_mag_list, y_mag_list):
        l = jnp.linalg.norm(y_mag - x_mag) / jnp.linalg.norm(y_mag)
        loss = loss + (l if sentence_avg else l * y_mag.shape[0])
    return loss


if __name__ == "__main__":
    key = jax.random.PRNGKey(0)
    ks = jax.random.split(key, 10)

    # Case 1: tiny demo shapes (2 utterances, 80 mel bins); magnitudes >= 0.
    small_x = [jnp.abs(jax.random.normal(ks[0], (16, 80), dtype=jnp.float32)),
               jnp.abs(jax.random.normal(ks[1], (24, 80), dtype=jnp.float32))]
    small_y = [jnp.abs(jax.random.normal(ks[2], (16, 80), dtype=jnp.float32)),
               jnp.abs(jax.random.normal(ks[3], (24, 80), dtype=jnp.float32))]

    # Case 2: ragged 3-sample batch exercising multi-sub-slice tiles,
    # in-tile sample boundaries, and the trailing zero pad.
    ragged_x = [jnp.abs(jax.random.normal(ks[4], (300, 80), dtype=jnp.float32)),
                jnp.abs(jax.random.normal(ks[5], (231, 80), dtype=jnp.float32)),
                jnp.abs(jax.random.normal(ks[6], (57, 80), dtype=jnp.float32))]
    ragged_y = [jnp.abs(jax.random.normal(ks[7], (300, 80), dtype=jnp.float32)),
                jnp.abs(jax.random.normal(ks[8], (231, 80), dtype=jnp.float32)),
                jnp.abs(jax.random.normal(ks[9], (57, 80), dtype=jnp.float32))]

    for xs, ys in ((small_x, small_y), (ragged_x, ragged_y)):
        for sentence_avg in (True, False):
            ref = _reference(xs, ys, sentence_avg)
            # Pallas kernel path (forced, so the kernel runs even at demo sizes).
            out = spectral_convergence_loss(xs, ys, sentence_avg, use_pallas=True)
            out = jax.block_until_ready(out)
            assert jnp.allclose(out, ref, rtol=1e-5, atol=1e-5), \
                (sentence_avg, out, ref)
            # Auto dispatch (tiny inputs take the plain-jnp fast path).
            out2 = spectral_convergence_loss(xs, ys, sentence_avg)
            out2 = jax.block_until_ready(out2)
            assert jnp.allclose(out2, ref, rtol=1e-5, atol=1e-5), \
                (sentence_avg, out2, ref)

    print("KERNEL_OK")
</pallas_src>

<mosaic_0001>
module attributes {stable_mosaic.version = 11 : i64} {
  func.func @kernel(%arg0: i32, %arg1: i32, %arg2: memref<2xi32, #tpu.memory_space<smem>>, %arg3: memref<8x8x128xf32, #tpu.memory_space<vmem>>, %arg4: memref<8x8x128xf32, #tpu.memory_space<vmem>>, %arg5: memref<2x8x128xf32, #tpu.memory_space<vmem>>, %arg6: memref<2x8x128xf32, #tpu.memory_space<vmem>>) attributes {dimension_semantics = [#tpu.dimension_semantics<parallel>, #tpu.dimension_semantics<arbitrary>], iteration_bounds = array<i64: 2, 1>, scalar_prefetch = 1 : i64, scratch_operands = 0 : i64, tpu.core_type = #tpu.core_type<tc>, window_params = [{transform_indices = @transform_0, window_bounds = array<i64: 8, 8, 128>}, {transform_indices = @transform_1, window_bounds = array<i64: 8, 8, 128>}, {transform_indices = @transform_2, window_bounds = array<i64: 2, 8, 128>}, {transform_indices = @transform_3, window_bounds = array<i64: 2, 8, 128>}]} {
    %c0_i32 = arith.constant 0 : i32
    %0 = arith.cmpi eq, %arg1, %c0_i32 : i32
    %1 = arith.extui %0 : i1 to i32
    %c0_i32_0 = arith.constant 0 : i32
    %2 = arith.cmpi ne, %1, %c0_i32_0 : i32
    scf.if %2 {
      %cst_16 = arith.constant 0.000000e+00 : f32
      %36 = vector.broadcast %cst_16 : f32 to vector<2x8x128xf32>
      %c0_17 = arith.constant 0 : index
      %c0_18 = arith.constant 0 : index
      %c0_19 = arith.constant 0 : index
      %37 = vector.load %arg5[%c0_17, %c0_18, %c0_19] : memref<2x8x128xf32, #tpu.memory_space<vmem>>, vector<2x8x128xf32>
      tpu.vector_store %arg5[%c0_17, %c0_18, %c0_19], %36 {strides = array<i32>} : memref<2x8x128xf32, #tpu.memory_space<vmem>>, vector<2x8x128xf32>,
      %cst_20 = arith.constant 0.000000e+00 : f32
      %38 = vector.broadcast %cst_20 : f32 to vector<2x8x128xf32>
      %c0_21 = arith.constant 0 : index
      %c0_22 = arith.constant 0 : index
      %c0_23 = arith.constant 0 : index
      %39 = vector.load %arg6[%c0_21, %c0_22, %c0_23] : memref<2x8x128xf32, #tpu.memory_space<vmem>>, vector<2x8x128xf32>
      tpu.vector_store %arg6[%c0_21, %c0_22, %c0_23], %38 {strides = array<i32>} : memref<2x8x128xf32, #tpu.memory_space<vmem>>, vector<2x8x128xf32>,
    } else {
    }
    %c1_i32 = arith.constant 1 : i32
    %3 = arith.muli %arg0, %c1_i32 : i32
    %4 = arith.addi %3, %arg1 : i32
    %c1_i32_1 = arith.constant 1 : i32
    %5 = arith.muli %4, %c1_i32_1 : i32
    %c0_i32_2 = arith.constant 0 : i32
    %6 = arith.addi %5, %c0_i32_2 : i32
    %7 = arith.index_cast %6 : i32 to index
    %8 = memref.load %arg2[%7] : memref<2xi32, #tpu.memory_space<smem>>
    %c8_i32 = arith.constant 8 : i32
    %9 = arith.muli %c0_i32_2, %c8_i32 : i32
    %10 = tpu.assume_multiple %9, 8 : i32
    %11 = arith.index_cast %10 : i32 to index
    %c0 = arith.constant 0 : index
    %c0_3 = arith.constant 0 : index
    %12 = vector.load %arg3[%11, %c0, %c0_3] : memref<8x8x128xf32, #tpu.memory_space<vmem>>, vector<8x8x128xf32>
    %13 = arith.index_cast %10 : i32 to index
    %c0_4 = arith.constant 0 : index
    %c0_5 = arith.constant 0 : index
    %14 = vector.load %arg4[%13, %c0_4, %c0_5] : memref<8x8x128xf32, #tpu.memory_space<vmem>>, vector<8x8x128xf32>
    %15 = arith.subf %14, %12 : vector<8x8x128xf32>
    %16 = arith.index_cast %8 : i32 to index
    %c0_6 = arith.constant 0 : index
    %c0_7 = arith.constant 0 : index
    %17 = vector.load %arg5[%16, %c0_6, %c0_7] : memref<2x8x128xf32, #tpu.memory_space<vmem>>, vector<1x8x128xf32>
    %18 = vector.shape_cast %17 : vector<1x8x128xf32> to vector<8x128xf32>
    %19 = arith.mulf %15, %15 : vector<8x8x128xf32>
    %cst = arith.constant dense<0.000000e+00> : vector<8x128xf32>
    %20 = vector.multi_reduction <add>, %19, %cst [0] : vector<8x8x128xf32> to vector<8x128xf32>
    %21 = arith.addf %18, %20 : vector<8x128xf32>
    %22 = arith.index_cast %8 : i32 to index
    %c0_8 = arith.constant 0 : index
    %c0_9 = arith.constant 0 : index
    %23 = vector.load %arg5[%22, %c0_8, %c0_9] : memref<2x8x128xf32, #tpu.memory_space<vmem>>, vector<1x8x128xf32>
    %24 = vector.shape_cast %23 : vector<1x8x128xf32> to vector<8x128xf32>
    %25 = vector.shape_cast %21 : vector<8x128xf32> to vector<1x8x128xf32>
    tpu.vector_store %arg5[%22, %c0_8, %c0_9], %25 {strides = array<i32>} : memref<2x8x128xf32, #tpu.memory_space<vmem>>, vector<1x8x128xf32>,
    %26 = arith.index_cast %8 : i32 to index
    %c0_10 = arith.constant 0 : index
    %c0_11 = arith.constant 0 : index
    %27 = vector.load %arg6[%26, %c0_10, %c0_11] : memref<2x8x128xf32, #tpu.memory_space<vmem>>, vector<1x8x128xf32>
    %28 = vector.shape_cast %27 : vector<1x8x128xf32> to vector<8x128xf32>
    %29 = arith.mulf %14, %14 : vector<8x8x128xf32>
    %cst_12 = arith.constant dense<0.000000e+00> : vector<8x128xf32>
    %30 = vector.multi_reduction <add>, %29, %cst_12 [0] : vector<8x8x128xf32> to vector<8x128xf32>
    %31 = arith.addf %28, %30 : vector<8x128xf32>
    %32 = arith.index_cast %8 : i32 to index
    %c0_13 = arith.constant 0 : index
    %c0_14 = arith.constant 0 : index
    %33 = vector.load %arg6[%32, %c0_13, %c0_14] : memref<2x8x128xf32, #tpu.memory_space<vmem>>, vector<1x8x128xf32>
    %34 = vector.shape_cast %33 : vector<1x8x128xf32> to vector<8x128xf32>
    %35 = vector.shape_cast %31 : vector<8x128xf32> to vector<1x8x128xf32>
    tpu.vector_store %arg6[%32, %c0_13, %c0_14], %35 {strides = array<i32>} : memref<2x8x128xf32, #tpu.memory_space<vmem>>, vector<1x8x128xf32>,
    %c1_i32_15 = arith.constant 1 : i32
    return
  }
  func.func @transform_0(%arg0: i32, %arg1: i32, %arg2: memref<2xi32, #tpu.memory_space<smem>>) -> (i32, i32, i32) {
    %c1_i32 = arith.constant 1 : i32
    %0 = arith.muli %arg0, %c1_i32 : i32
    %1 = arith.addi %0, %arg1 : i32
    %c0_i32 = arith.constant 0 : i32
    %c0_i32_0 = arith.constant 0 : i32
    %c0_i32_1 = arith.constant 0 : i32
    return %1, %c0_i32, %c0_i32_0 : i32, i32, i32
  }
  func.func @transform_1(%arg0: i32, %arg1: i32, %arg2: memref<2xi32, #tpu.memory_space<smem>>) -> (i32, i32, i32) {
    %c1_i32 = arith.constant 1 : i32
    %0 = arith.muli %arg0, %c1_i32 : i32
    %1 = arith.addi %0, %arg1 : i32
    %c0_i32 = arith.constant 0 : i32
    %c0_i32_0 = arith.constant 0 : i32
    %c0_i32_1 = arith.constant 0 : i32
    return %1, %c0_i32, %c0_i32_0 : i32, i32, i32
  }
  func.func @transform_2(%arg0: i32, %arg1: i32, %arg2: memref<2xi32, #tpu.memory_space<smem>>) -> (i32, i32, i32) {
    %c0_i32 = arith.constant 0 : i32
    %c0_i32_0 = arith.constant 0 : i32
    %c0_i32_1 = arith.constant 0 : i32
    return %arg0, %c0_i32, %c0_i32_0 : i32, i32, i32
  }
  func.func @transform_3(%arg0: i32, %arg1: i32, %arg2: memref<2xi32, #tpu.memory_space<smem>>) -> (i32, i32, i32) {
    %c0_i32 = arith.constant 0 : i32
    %c0_i32_0 = arith.constant 0 : i32
    %c0_i32_1 = arith.constant 0 : i32
    return %arg0, %c0_i32, %c0_i32_0 : i32, i32, i32
  }
}

</mosaic_0001>

<llo_original>
// kernel: _sc_partial_sums.1
$region0: #{_sc_partial_sums.1}
  #allocation0 [shape = 'u32[]', space=smem, size = 0x4, offset = 0x4, fixed_abs, tag = 'smem constant byte address 0x4 - core index']
  #allocation1 [shape = 'u32[144,128]{1,0:T(1,128)}', space=vmem, size = 0x12000, scoped, tag = 'internal scratch']
  #allocation2 [shape = 's32[1]{0}', space=sflag, size = 0x4, scoped, tag = 'scoped memory for _sc_partial_sums.1']
  #allocation3 [shape = 'u8[512]{0}', space=smem, size = 0x200, scoped, tag = 'prefetched SMEM operand 0']
  %s0 = inlined_call_operand.hbm [shape: s32[2], index: 0, kind: input, shape index: {}]
  %s1 = inlined_call_operand.hbm [shape: f32[16,8,128], index: 1, kind: input, shape index: {}]
  %s2 = inlined_call_operand.hbm [shape: f32[16,8,128], index: 2, kind: input, shape index: {}]
  %s3 = inlined_call_operand.vmem [shape: f32[4,8,128], index: 3, kind: output, shape index: {0}]
  %s4 = inlined_call_operand.vmem [shape: f32[4,8,128], index: 4, kind: output, shape index: {1}]
  %5 = xla_tuple %s3, %s4
  %s6 = sld [smem:[#allocation0]]
  $region61: #{_sc_partial_sums.1} parent=0
    _
  %s8 = ssub.s32 1, %s6
  %s9 = scalar_select 0, %s8, %s6
  %11 = dma.hbm_to_smem %s0, 16, [#allocation3], [#allocation2]
  %12 = dma.done [#allocation2], 16
  %13 = sfence
  $region1: #{_sc_partial_sums.1} parent=0
    #allocation4 [shape = 'u8[65536]{0}', space=vmem, size = 0x10000, scoped, tag = 'input window, operand 1']
    #allocation5 [shape = 's32[2]{0}', space=sflag, size = 0x8, scoped, tag = 'scoped memory for _sc_partial_sums.1']
    #allocation6 [shape = 'u8[65536]{0}', space=vmem, size = 0x10000, scoped, tag = 'input window, operand 2']
    #allocation7 [shape = 's32[2]{0}', space=sflag, size = 0x8, scoped, tag = 'scoped memory for _sc_partial_sums.1']
    %14 = vsyncpa [#allocation5], 0
    %s15 = scalar_lea.sflag [#allocation5], 1
    %16 = vsyncpa %s15, 0
    %17 = vsyncpa [#allocation7], 0
    %s18 = scalar_lea.sflag [#allocation7], 1
    %19 = vsyncpa %s18, 0
    loop: start=0, step=1, limit=4
    $region2: #{_sc_partial_sums.1} parent=1 // loop_pre_header
      _
    $region3: #{_sc_partial_sums.1} parent=1 // loop_header
      %s21 = sphi 0, %s25
      %p22 = scmp.ge.s32.totalorder %s21, 4
      %s28 = sphi 0, %s40
      %s29 = sphi 0, %s36
      %s30 = sphi 0, %s28
      %s31 = sphi 0, %s29
      %s32 = sphi 0, %s30
      %s33 = sphi 0, %s31
      %s45 = sphi 0, %s47
      %s48 = sphi 0, %s45
      %s49 = sphi 0, %s48
      %s65 = sphi 0, %s49
      %s73 = sphi 0, %s75
      %s76 = sphi 0, %s73
      %s77 = sphi 0, %s76
      %s93 = sphi 0, %s77
      %s99 = sphi 0, %s101
      %s102 = sphi 0, %s99
      %s103 = sphi 0, %s102
      %s119 = sphi 0, %s103
      %s125 = sphi 0, %s127
      %s128 = sphi 0, %s125
      %s129 = sphi 0, %s128
      %s145 = sphi 0, %s129
    $region4: #{_sc_partial_sums.1} parent=1 // loop_header_branch
      %24 = sbr.rel (%p22) target = $region8
    $region5: #{_sc_partial_sums.1} parent=1 // loop_body
      %s26 = ssub.s32 %s21, 1
      %s27 = ssub.s32 %s21, 2
      %s34 = sadd.s32 1, %s29
      %p35 = scmp.ge.s32.totalorder %s34, 1
      %s36 = scalar_select %p35, 0, %s34
      %s37 = sadd.s32 1, %s28
      %s38 = scalar_select %p35, %s37, %s28
      %p39 = scmp.ge.s32.totalorder %s38, 2
      %s40 = scalar_select %p39, 0, %s38
      %s41 = sadd.s32 %s28, %s29
      %s42 = sadd.s32 %s40, %s36
      %s43 = ssub.s32 %s41, %s42
      %p44 = scmp.eq.s32.totalorder %s43, 0
      %s46 = sadd.s32 %s45, 1
      %s47 = scalar_select %p44, %s45, %s46
      %p50 = pneg %p44
      %p51 = scmp.eq.s32.totalorder %s21, 1
      %p52 = por %p50, %p51
      %p53 = scmp.ne.s32.totalorder %s45, %s48
      %p54 = scmp.eq.s32.totalorder %s21, 0
      %p55 = por %p53, %p54
      %p56 = scmp.ne.s32.totalorder %s45, %s48
      %p57 = scmp.eq.s32.totalorder %s26, 1
      %p58 = por %p56, %p57
      %p59 = scmp.ne.s32.totalorder %s48, %s49
      %p60 = scmp.eq.s32.totalorder %s26, 0
      %p61 = por %p59, %p60
      %p62 = scmp.ne.s32.totalorder %s48, %s49
      %p63 = scmp.eq.s32.totalorder %s27, 1
      %p64 = por %p62, %p63
      %p66 = scmp.ne.s32.totalorder %s49, %s65
      %p67 = scmp.eq.s32.totalorder %s27, 0
      %p68 = por %p66, %p67
      %s69 = sadd.s32 %s28, %s29
      %s70 = sadd.s32 %s40, %s36
      %s71 = ssub.s32 %s69, %s70
      %p72 = scmp.eq.s32.totalorder %s71, 0
      %s74 = sadd.s32 %s73, 1
      %s75 = scalar_select %p72, %s73, %s74
      %p78 = pneg %p72
      %p79 = scmp.eq.s32.totalorder %s21, 1
      %p80 = por %p78, %p79
      %p81 = scmp.ne.s32.totalorder %s73, %s76
      %p82 = scmp.eq.s32.totalorder %s21, 0
      %p83 = por %p81, %p82
      %p84 = scmp.ne.s32.totalorder %s73, %s76
      %p85 = scmp.eq.s32.totalorder %s26, 1
      %p86 = por %p84, %p85
      %p87 = scmp.ne.s32.totalorder %s76, %s77
      %p88 = scmp.eq.s32.totalorder %s26, 0
      %p89 = por %p87, %p88
      %p90 = scmp.ne.s32.totalorder %s76, %s77
      %p91 = scmp.eq.s32.totalorder %s27, 1
      %p92 = por %p90, %p91
      %p94 = scmp.ne.s32.totalorder %s77, %s93
      %p95 = scmp.eq.s32.totalorder %s27, 0
      %p96 = por %p94, %p95
      %s97 = ssub.s32 %s28, %s40
      %p98 = scmp.eq.s32.totalorder %s97, 0
      %s100 = sadd.s32 %s99, 1
      %s101 = scalar_select %p98, %s99, %s100
      %p104 = pneg %p98
      %p105 = scmp.eq.s32.totalorder %s21, 1
      %p106 = por %p104, %p105
      %p107 = scmp.ne.s32.totalorder %s99, %s102
      %p108 = scmp.eq.s32.totalorder %s21, 0
      %p109 = por %p107, %p108
      %p110 = scmp.ne.s32.totalorder %s99, %s102
      %p111 = scmp.eq.s32.totalorder %s26, 1
      %p112 = por %p110, %p111
      %p113 = scmp.ne.s32.totalorder %s102, %s103
      %p114 = scmp.eq.s32.totalorder %s26, 0
      %p115 = por %p113, %p114
      %p116 = scmp.ne.s32.totalorder %s102, %s103
      %p117 = scmp.eq.s32.totalorder %s27, 1
      %p118 = por %p116, %p117
      %p120 = scmp.ne.s32.totalorder %s103, %s119
      %p121 = scmp.eq.s32.totalorder %s27, 0
      %p122 = por %p120, %p121
      %s123 = ssub.s32 %s28, %s40
      %p124 = scmp.eq.s32.totalorder %s123, 0
      %s126 = sadd.s32 %s125, 1
      %s127 = scalar_select %p124, %s125, %s126
      %p130 = pneg %p124
      %p131 = scmp.eq.s32.totalorder %s21, 1
      %p132 = por %p130, %p131
      %p133 = scmp.ne.s32.totalorder %s125, %s128
      %p134 = scmp.eq.s32.totalorder %s21, 0
      %p135 = por %p133, %p134
      %p136 = scmp.ne.s32.totalorder %s125, %s128
      %p137 = scmp.eq.s32.totalorder %s26, 1
      %p138 = por %p136, %p137
      %p139 = scmp.ne.s32.totalorder %s128, %s129
      %p140 = scmp.eq.s32.totalorder %s26, 0
      %p141 = por %p139, %p140
      %p142 = scmp.ne.s32.totalorder %s128, %s129
      %p143 = scmp.eq.s32.totalorder %s27, 1
      %p144 = por %p142, %p143
      %p146 = scmp.ne.s32.totalorder %s129, %s145
      %p147 = scmp.eq.s32.totalorder %s27, 0
      %p148 = por %p146, %p147
      %p149 = scmp.le.s32.totalorder 1, %s21
      %p150 = scmp.lt.s32.totalorder %s21, 3
      %p151 = pnand %p149, %p150
      %p152 = pneg %p151
      // Predicated region
      $region9: #{_sc_partial_sums.1} parent=5 // pred_check
        _
      $region10: #{_sc_partial_sums.1} parent=5 // pred_check_branch
        %154 = sbr.rel (%p151) target = $region12
      $region11: #{_sc_partial_sums.1} parent=5 // pred_region
        %s155 = ssub.s32 %s21, 1
      $region12: #{_sc_partial_sums.1} parent=5 // pred_fallthru
        _
      %p156 = scmp.lt.s32.totalorder %s21, 2
      // Predicated region
      $region13: #{_sc_partial_sums.1} parent=5 // pred_check
        %p157 = pneg %p156
      $region14: #{_sc_partial_sums.1} parent=5 // pred_check_branch
        %159 = sbr.rel (%p157) target = $region16
      $region15: #{_sc_partial_sums.1} parent=5 // pred_region
        // Predicated region
        $region17: #{_sc_partial_sums.1} parent=15 // pred_check
          %p160 = pneg %p55
        $region18: #{_sc_partial_sums.1} parent=15 // pred_check_branch
          %162 = sbr.rel (%p160) target = $region20
        $region19: #{_sc_partial_sums.1} parent=15 // pred_region
          %s163 = sand.u32 %s45, 1
          %s164 = scalar_lea.sflag [#allocation5], %s163
          %s165 = sand.u32 %s45, 1
          %s166 = smul.addr %s165, 64
          %s167 = scalar_lea.vmem [#allocation4], %s166
          %s168 = sadd.s32 %s28, %s29
          %s169 = smul.u32 8, %s168
          %s171 = ssub.s32 1024, 1024
          %172 = vsyncadd %s164, %s171
          %s173 = smul.addr %s169, 128
          %s174 = scalar_lea.hbm %s1, %s173
          %s175 = sshll.u32 %s167, 4
          %s176 = int_to_ptr.vmem [resolvable:$true] %s175
          %181 = dma.hbm_to_vmem [thread:$0]  %s174, 1024, %s176, %s164, 128, 128, 8
        $region20: #{_sc_partial_sums.1} parent=15 // pred_fallthru
          _
        // Predicated region
        $region21: #{_sc_partial_sums.1} parent=15 // pred_check
          %p182 = pneg %p83
        $region22: #{_sc_partial_sums.1} parent=15 // pred_check_branch
          %184 = sbr.rel (%p182) target = $region24
        $region23: #{_sc_partial_sums.1} parent=15 // pred_region
          %s185 = sand.u32 %s73, 1
          %s186 = scalar_lea.sflag [#allocation7], %s185
          %s187 = sand.u32 %s73, 1
          %s188 = smul.addr %s187, 64
          %s189 = scalar_lea.vmem [#allocation6], %s188
          %s190 = sadd.s32 %s28, %s29
          %s191 = smul.u32 8, %s190
          %s193 = ssub.s32 1024, 1024
          %194 = vsyncadd %s186, %s193
          %s195 = smul.addr %s191, 128
          %s196 = scalar_lea.hbm %s2, %s195
          %s197 = sshll.u32 %s189, 4
          %s198 = int_to_ptr.vmem [resolvable:$true] %s197
          %203 = dma.hbm_to_vmem [thread:$0]  %s196, 1024, %s198, %s186, 128, 128, 8
        $region24: #{_sc_partial_sums.1} parent=15 // pred_fallthru
          _
      $region16: #{_sc_partial_sums.1} parent=5 // pred_fallthru
        _
      %p204 = scmp.le.s32.totalorder 1, %s21
      %p205 = scmp.lt.s32.totalorder %s21, 3
      %p206 = pnand %p204, %p205
      %p207 = pneg %p206
      // Predicated region
      $region25: #{_sc_partial_sums.1} parent=5 // pred_check
        _
      $region26: #{_sc_partial_sums.1} parent=5 // pred_check_branch
        %209 = sbr.rel (%p206) target = $region28
      $region27: #{_sc_partial_sums.1} parent=5 // pred_region
        %s210 = ssub.s32 %s21, 1
        %s211 = sand.u32 %s48, 1
        %s212 = scalar_lea.sflag [#allocation5], %s211
        %s213 = sand.u32 %s48, 1
        %s214 = smul.addr %s213, 64
        %s215 = scalar_lea.vmem [#allocation4], %s214
        // Predicated region
        $region29: #{_sc_partial_sums.1} parent=27 // pred_check
          %p216 = pneg %p61
        $region30: #{_sc_partial_sums.1} parent=27 // pred_check_branch
          %218 = sbr.rel (%p216) target = $region32
        $region31: #{_sc_partial_sums.1} parent=27 // pred_region
          %219 = dma.done %s212, 1024
        $region32: #{_sc_partial_sums.1} parent=27 // pred_fallthru
          _
        %s220 = sand.u32 %s76, 1
        %s221 = scalar_lea.sflag [#allocation7], %s220
        %s222 = sand.u32 %s76, 1
        %s223 = smul.addr %s222, 64
        %s224 = scalar_lea.vmem [#allocation6], %s223
        // Predicated region
        $region33: #{_sc_partial_sums.1} parent=27 // pred_check
          %p225 = pneg %p89
        $region34: #{_sc_partial_sums.1} parent=27 // pred_check_branch
          %227 = sbr.rel (%p225) target = $region36
        $region35: #{_sc_partial_sums.1} parent=27 // pred_region
          %228 = dma.done %s221, 1024
        $region36: #{_sc_partial_sums.1} parent=27 // pred_fallthru
          _
        %s229 = sand.u32 %s48, 1
        %s230 = scalar_lea.sflag [#allocation5], %s229
        %s231 = sand.u32 %s48, 1
        %s232 = smul.addr %s231, 64
        %s233 = scalar_lea.vmem [#allocation4], %s232
        %p234 = pneg %p61
        %p235 = pneg %p58
        %s236 = sand.u32 %s76, 1
        %s237 = scalar_lea.sflag [#allocation7], %s236
        %s238 = sand.u32 %s76, 1
        %s239 = smul.addr %s238, 64
        %s240 = scalar_lea.vmem [#allocation6], %s239
        %p241 = pneg %p89
        %p242 = pneg %p86
        %p243 = pneg %p115
        %p244 = pneg %p112
        %s245 = smul.u32 2, %s30
        %p246 = scmp.lt.s32.totalorder %s245, 3
        %s247 = scalar_select %p246, %s245, 3
        %s248 = smul.addr %s247, 8
        %s249 = scalar_lea.vmem %s3, %s248
        %p250 = pneg %p141
        %p251 = pneg %p138
        %s252 = smul.u32 2, %s30
        %p253 = scmp.lt.s32.totalorder %s252, 3
        %s254 = scalar_select %p253, %s252, 3
        %s255 = smul.addr %s254, 8
        %s256 = scalar_lea.vmem %s4, %s255
        %s257 = sadd.s32 %s30, %s31
        %s258 = smul.u32 8, %s257
        %s259 = sadd.s32 %s30, %s31
        %s260 = smul.u32 8, %s259
        %s261 = smul.u32 2, %s30
        %p262 = scmp.lt.s32.totalorder %s261, 3
        %s263 = scalar_select %p262, %s261, 3
        %s264 = smul.addr %s263, 8
        %s265 = scalar_lea.vmem %s3, %s264
        %s266 = smul.u32 2, %s30
        %s267 = smul.u32 2, %s30
        %p268 = scmp.lt.s32.totalorder %s267, 3
        %s269 = scalar_select %p268, %s267, 3
        %s270 = smul.addr %s269, 8
        %s271 = scalar_lea.vmem %s4, %s270
        %s272 = smul.u32 2, %s30
        %p273 = scmp.eq.s32.totalorder %s31, 0
        // Predicated region
        $region37: #{_sc_partial_sums.1} parent=27 // pred_check
          %p274 = pneg %p273
        $region38: #{_sc_partial_sums.1} parent=27 // pred_check_branch
          %276 = sbr.rel (%p274) target = $region40
        $region39: #{_sc_partial_sums.1} parent=27 // pred_region
          %277 = vst [vmem:[%s265] sm:$0xff] 0.0
          %278 = vst [vmem:[%s265 + $0x8] sm:$0xff] 0.0
          %279 = vst [vmem:[%s271] sm:$0xff] 0.0
          %280 = vst [vmem:[%s271 + $0x8] sm:$0xff] 0.0
        $region40: #{_sc_partial_sums.1} parent=27 // pred_fallthru
          _
        %s281 = sadd.s32 %s30, %s31
        %s282 = sld [smem:[#allocation3 + %s281]]
        %s283 = smul.u32 0, 8
        %s284 = scalar_lea.vmem %s215, %s283 [#allocation4]
        %v285 = vld [vmem:[%s284] sm:$0xff]
        %v286 = vld [vmem:[%s284 + $0x8] sm:$0xff]
        %v287 = vld [vmem:[%s284 + $0x10] sm:$0xff]
        %v288 = vld [vmem:[%s284 + $0x18] sm:$0xff]
        %v289 = vld [vmem:[%s284 + $0x20] sm:$0xff]
        %v290 = vld [vmem:[%s284 + $0x28] sm:$0xff]
        %v291 = vld [vmem:[%s284 + $0x30] sm:$0xff]
        %v292 = vld [vmem:[%s284 + $0x38] sm:$0xff]
        %s293 = scalar_lea.vmem %s224, %s283 [#allocation6]
        %v294 = vld [vmem:[%s293] sm:$0xff]
        %v295 = vld [vmem:[%s293 + $0x8] sm:$0xff]
        %v296 = vld [vmem:[%s293 + $0x10] sm:$0xff]
        %v297 = vld [vmem:[%s293 + $0x18] sm:$0xff]
        %v298 = vld [vmem:[%s293 + $0x20] sm:$0xff]
        %v299 = vld [vmem:[%s293 + $0x28] sm:$0xff]
        %v300 = vld [vmem:[%s293 + $0x30] sm:$0xff]
        %v301 = vld [vmem:[%s293 + $0x38] sm:$0xff]
        %v302 = vsub.f32 %v294, %v285
        %v303 = vsub.f32 %v295, %v286
        %v304 = vsub.f32 %v296, %v287
        %v305 = vsub.f32 %v297, %v288
        %v306 = vsub.f32 %v298, %v289
        %v307 = vsub.f32 %v299, %v290
        %v308 = vsub.f32 %v300, %v291
        %v309 = vsub.f32 %v301, %v292
        %s310 = smul.u32 %s282, 8
        %s311 = scalar_lea.vmem %s265, %s310
        %v312 = vld [vmem:[%s311] sm:$0xff]
        %v313 = vmul.f32 %v302, %v302
        %v314 = vmul.f32 %v303, %v303
        %v315 = vmul.f32 %v304, %v304
        %v316 = vmul.f32 %v305, %v305
        %v317 = vmul.f32 %v306, %v306
        %v318 = vmul.f32 %v307, %v307
        %v319 = vmul.f32 %v308, %v308
        %v320 = vmul.f32 %v309, %v309
        %v321 = vadd.f32 %v313, %v314
        %v322 = vadd.f32 %v321, %v315
        %v323 = vadd.f32 %v322, %v316
        %v324 = vadd.f32 %v323, %v317
        %v325 = vadd.f32 %v324, %v318
        %v326 = vadd.f32 %v325, %v319
        %v327 = vadd.f32 %v326, %v320
        %v328 = vadd.f32 %v312, %v327
        %329 = vst [vmem:[%s311] sm:$0xff] %v328
        %s330 = scalar_lea.vmem %s271, %s310
        %v331 = vld [vmem:[%s330] sm:$0xff]
        %v332 = vmul.f32 %v294, %v294
        %v333 = vmul.f32 %v295, %v295
        %v334 = vmul.f32 %v296, %v296
        %v335 = vmul.f32 %v297, %v297
        %v336 = vmul.f32 %v298, %v298
        %v337 = vmul.f32 %v299, %v299
        %v338 = vmul.f32 %v300, %v300
        %v339 = vmul.f32 %v301, %v301
        %v340 = vadd.f32 %v332, %v333
        %v341 = vadd.f32 %v340, %v334
        %v342 = vadd.f32 %v341, %v335
        %v343 = vadd.f32 %v342, %v336
        %v344 = vadd.f32 %v343, %v337
        %v345 = vadd.f32 %v344, %v338
        %v346 = vadd.f32 %v345, %v339
        %v347 = vadd.f32 %v331, %v346
        %348 = vst [vmem:[%s330] sm:$0xff] %v347
        %s349 = smul.u32 2, %s30
        %p350 = scmp.lt.s32.totalorder %s349, 3
        %s351 = scalar_select %p350, %s349, 3
        %s352 = smul.addr %s351, 8
        %s353 = scalar_lea.vmem %s3, %s352
        %s354 = smul.u32 2, %s30
        %p355 = scmp.lt.s32.totalorder %s354, 3
        %s356 = scalar_select %p355, %s354, 3
        %s357 = smul.addr %s356, 8
        %s358 = scalar_lea.vmem %s4, %s357
        // Predicated region
        $region41: #{_sc_partial_sums.1} parent=27 // pred_check
          %p359 = pneg %p112
        $region42: #{_sc_partial_sums.1} parent=27 // pred_check_branch
          %361 = sbr.rel (%p359) target = $region44
        $region43: #{_sc_partial_sums.1} parent=27 // pred_region
          %s362 = smul.u32 2, %s30
        $region44: #{_sc_partial_sums.1} parent=27 // pred_fallthru
          _
        // Predicated region
        $region45: #{_sc_partial_sums.1} parent=27 // pred_check
          %p363 = pneg %p138
        $region46: #{_sc_partial_sums.1} parent=27 // pred_check_branch
          %365 = sbr.rel (%p363) target = $region48
        $region47: #{_sc_partial_sums.1} parent=27 // pred_region
          %s366 = smul.u32 2, %s30
        $region48: #{_sc_partial_sums.1} parent=27 // pred_fallthru
          _
      $region28: #{_sc_partial_sums.1} parent=5 // pred_fallthru
        _
      %p367 = scmp.le.s32.totalorder 2, %s21
      // Predicated region
      $region49: #{_sc_partial_sums.1} parent=5 // pred_check
        %p368 = pneg %p367
      $region50: #{_sc_partial_sums.1} parent=5 // pred_check_branch
        %370 = sbr.rel (%p368) target = $region52
      $region51: #{_sc_partial_sums.1} parent=5 // pred_region
        %s371 = ssub.s32 %s21, 2
        // Predicated region
        $region53: #{_sc_partial_sums.1} parent=51 // pred_check
          %p372 = pneg %p118
        $region54: #{_sc_partial_sums.1} parent=51 // pred_check_branch
          %374 = sbr.rel (%p372) target = $region56
        $region55: #{_sc_partial_sums.1} parent=51 // pred_region
          %s375 = smul.u32 2, %s32
          %p376 = scmp.lt.s32.totalorder %s375, 3
          %s377 = scalar_select %p376, %s375, 3
          %s378 = smul.addr %s377, 8
          %s379 = scalar_lea.vmem %s3, %s378
        $region56: #{_sc_partial_sums.1} parent=51 // pred_fallthru
          _
        // Predicated region
        $region57: #{_sc_partial_sums.1} parent=51 // pred_check
          %p380 = pneg %p144
        $region58: #{_sc_partial_sums.1} parent=51 // pred_check_branch
          %382 = sbr.rel (%p380) target = $region60
        $region59: #{_sc_partial_sums.1} parent=51 // pred_region
          %s383 = smul.u32 2, %s32
          %p384 = scmp.lt.s32.totalorder %s383, 3
          %s385 = scalar_select %p384, %s383, 3
          %s386 = smul.addr %s385, 8
          %s387 = scalar_lea.vmem %s4, %s386
        $region60: #{_sc_partial_sums.1} parent=51 // pred_fallthru
          _
      $region52: #{_sc_partial_sums.1} parent=5 // pred_fallthru
        _
    $region6: #{_sc_partial_sums.1} parent=1 // loop_footer
      %s25 = sadd.s32 1, %s21
    $region7: #{_sc_partial_sums.1} parent=1 // loop_footer_branch
      %20 = sbr.rel target = $region3
    $region8: #{_sc_partial_sums.1} parent=1 // loop_exit
      _
    %388 = vsyncpa [#allocation5], 1
    %s389 = scalar_lea.sflag [#allocation5], 1
    %390 = vsyncpa %s389, 1
    %391 = vsyncpa [#allocation7], 1
    %s392 = scalar_lea.sflag [#allocation7], 1
    %393 = vsyncpa %s392, 1

</llo_original>
